<compile_context>
chip_gen: v7x
topology: tpu7x:2x2x1
jax: 0.10.0
libtpu: 0.0.40
codegen_flags: <defaults>
</compile_context>

<pallas_src>
import jax
import jax.numpy as jnp
from jax.experimental import pallas as pl
from jax.experimental.pallas import tpu as pltpu


def _round_up(x, m):
    return ((x + m - 1) // m) * m


def mlp_kernel(x_ref, w1_ref, b1_ref, w2_ref, b2_ref, o_ref):
    # x_ref : (TB, D_in)  native dtype (cast in-kernel)
    # w1_ref: (D_in, Hp)  compute dtype     b1_ref: (1, Hp) f32
    # w2_ref: (Hp, Cp)    compute dtype     b2_ref: (1, C)  f32
    # o_ref : (TB, C)     f32
    C = o_ref.shape[-1]
    # Cast on the VPU (mem-bound kernel -> the cast is free filler).
    x = x_ref[...].astype(w1_ref.dtype)
    # fc1 on the MXU, f32 accumulation; bias + ReLU stay in f32 on the VPU.
    h = jnp.dot(x, w1_ref[...], preferred_element_type=jnp.float32)
    h = jnp.maximum(h + b1_ref[...], 0.0)
    # fc2: lane-padded N for an aligned MXU dot, f32 accumulation.
    out = jnp.dot(h.astype(w2_ref.dtype), w2_ref[...],
                  preferred_element_type=jnp.float32)
    # Drop padded class lanes, add bias, store the narrow (TB, C) block.
    o_ref[...] = (out[:, :C] + b2_ref[...]).astype(o_ref.dtype)


def prepare_params(w1, b1, w2, b2, *, compute_dtype=jnp.bfloat16):
    """Pad H (and w2's class dim) to lane multiples and cast weights ONCE.

    Zero padding is pure layout plumbing: ReLU(0 + 0) = 0 contributes nothing
    to fc2, and the padded class lanes are sliced off inside the kernel.
    """
    D_in, H = w1.shape
    H2, C = w2.shape
    assert H2 == H
    Hp = _round_up(H, 128)
    Cp = _round_up(C, 128)
    w1p = jnp.zeros((D_in, Hp), compute_dtype).at[:, :H].set(w1.astype(compute_dtype))
    b1p = jnp.zeros((1, Hp), jnp.float32).at[0, :H].set(b1.astype(jnp.float32))
    w2p = jnp.zeros((Hp, Cp), compute_dtype).at[:H, :C].set(w2.astype(compute_dtype))
    b2p = b2.astype(jnp.float32).reshape(1, C)
    return w1p, b1p, w2p, b2p


def relu_mnist_apply(x, params, *, batch_tile=None):
    """x: (B, D_in) any float dtype; params from prepare_params. Returns f32 (B, C)."""
    w1p, b1p, w2p, b2p = params
    B, D_in = x.shape
    assert w1p.shape[0] == D_in
    Hp = w1p.shape[1]
    Cp = w2p.shape[1]
    C = b2p.shape[1]

    # ---- Batch tile: multiple of 8 rows, VMEM-capped, >= 2 grid steps if possible.
    if B <= 8:
        batch_tile = B  # single full-dim block (full array dim is a legal block dim)
    else:
        if batch_tile is None:
            row_bytes = D_in * x.dtype.itemsize
            vmem_cap_rows = max(8, (8 * 1024 * 1024) // max(1, row_bytes))
            batch_tile = min(2048, vmem_cap_rows)
        batch_tile = max(8, (batch_tile // 8) * 8)
        batch_tile = min(batch_tile, _round_up(B, 8))
        # v7x megacore: the "parallel" batch axis needs >= 2 steps to use both TCs.
        if pl.cdiv(B, batch_tile) < 2:
            batch_tile = max(8, _round_up(pl.cdiv(B, 2), 8))

    grid = (pl.cdiv(B, batch_tile),)

    # ---- Tight VMEM budget: double-buffered x/out streams + resident weights
    # + in-kernel temporaries + 8 MiB headroom (no more declaring all of VMEM).
    def lane(n):
        return _round_up(n, 128)

    def sub(n):
        return _round_up(n, 8)

    w_isz = w1p.dtype.itemsize
    vmem_limit = int(
        2 * sub(batch_tile) * lane(D_in) * x.dtype.itemsize   # x stream (2 bufs)
        + 2 * sub(batch_tile) * lane(C) * 4                   # out stream (2 bufs)
        + 2 * (sub(D_in) * Hp + Hp * Cp) * w_isz              # weights (2 bufs)
        + 2 * (8 * Hp + 8 * lane(C)) * 4                      # biases
        + sub(batch_tile) * (Hp + 2 * Cp) * 4                 # h / fc2 temporaries
        + (8 << 20))                                          # headroom

    cost = pl.CostEstimate(
        flops=2 * B * (D_in * Hp + Hp * Cp),
        transcendentals=0,
        bytes_accessed=(B * D_in * x.dtype.itemsize           # x stream
                        + D_in * Hp * w_isz                   # w1
                        + Hp * Cp * w_isz                     # w2
                        + (Hp + C) * 4                        # biases
                        + B * C * 4),                         # output
    )

    return pl.pallas_call(
        mlp_kernel,
        out_shape=jax.ShapeDtypeStruct((B, C), jnp.float32),
        grid_spec=pltpu.PrefetchScalarGridSpec(
            num_scalar_prefetch=0,
            grid=grid,
            in_specs=[
                pl.BlockSpec((batch_tile, D_in), lambda i: (i, 0)),  # x (streamed)
                pl.BlockSpec((D_in, Hp), lambda i: (0, 0)),          # w1 (resident)
                pl.BlockSpec((1, Hp), lambda i: (0, 0)),             # b1 (resident)
                pl.BlockSpec((Hp, Cp), lambda i: (0, 0)),            # w2 (resident)
                pl.BlockSpec((1, C), lambda i: (0, 0)),              # b2 (resident)
            ],
            out_specs=pl.BlockSpec((batch_tile, C), lambda i: (i, 0)),
        ),
        compiler_params=pltpu.CompilerParams(
            dimension_semantics=("parallel",),
            vmem_limit_bytes=vmem_limit,
        ),
        cost_estimate=cost,
    )(x, w1p, b1p, w2p, b2p)


def relu_mnist_forward(x, w1, b1, w2, b2, *, batch_tile=None,
                       compute_dtype=jnp.bfloat16):
    """Convenience wrapper: pad/cast weights and run the fused kernel."""
    params = prepare_params(w1, b1, w2, b2, compute_dtype=compute_dtype)
    return relu_mnist_apply(x, params, batch_tile=batch_tile)


def reference_forward(x, w1, b1, w2, b2):
    h = jnp.maximum(x @ w1 + b1, 0.0)
    return h @ w2 + b2


if __name__ == "__main__":
    # Small shapes consistent with the module: Linear(input_size, hidden),
    # ReLU, Linear(hidden, num_classes).
    batch = 8
    input_size = 64
    hidden_size = 32
    num_classes = 10

    key = jax.random.PRNGKey(0)
    kx, k1, k2, k3, k4 = jax.random.split(key, 5)

    x = jax.random.normal(kx, (batch, input_size), dtype=jnp.float32)
    # PyTorch-like init (uniform in +-1/sqrt(fan_in)), stored pre-transposed (in, out).
    lim1 = 1.0 / jnp.sqrt(jnp.float32(input_size))
    lim2 = 1.0 / jnp.sqrt(jnp.float32(hidden_size))
    w1 = jax.random.uniform(k1, (input_size, hidden_size), jnp.float32, -lim1, lim1)
    b1 = jax.random.uniform(k2, (hidden_size,), jnp.float32, -lim1, lim1)
    w2 = jax.random.uniform(k3, (hidden_size, num_classes), jnp.float32, -lim2, lim2)
    b2 = jax.random.uniform(k4, (num_classes,), jnp.float32, -lim2, lim2)

    # 1) f32 compute path: exact check against the pure-JAX reference.
    params_f32 = prepare_params(w1, b1, w2, b2, compute_dtype=jnp.float32)
    out_f32 = jax.block_until_ready(relu_mnist_apply(x, params_f32))
    ref = reference_forward(x, w1, b1, w2, b2)
    assert out_f32.shape == (batch, num_classes)
    assert jnp.allclose(out_f32, ref, atol=1e-5, rtol=1e-5)

    # 2) bf16 weight path (default perf path; x cast to bf16 inside the kernel).
    params_bf16 = prepare_params(w1, b1, w2, b2)  # hoisted: prepared once, reused
    out_bf16 = jax.block_until_ready(relu_mnist_apply(x, params_bf16))
    ref_bf16 = reference_forward(
        x.astype(jnp.bfloat16).astype(jnp.float32),
        w1.astype(jnp.bfloat16).astype(jnp.float32), b1,
        w2.astype(jnp.bfloat16).astype(jnp.float32), b2)
    assert out_bf16.shape == (batch, num_classes)
    assert jnp.allclose(out_bf16, ref_bf16, atol=5e-2, rtol=5e-2)

    # 3) Non-divisible batch + multi-step grid: exercises the cdiv grid with a
    #    partial (out-of-bounds) last block — no wrapper padding or slicing.
    x2 = jax.random.normal(kx, (20, input_size), dtype=jnp.float32)
    out2 = jax.block_until_ready(relu_mnist_apply(x2, params_f32, batch_tile=8))
    ref2 = reference_forward(x2, w1, b1, w2, b2)
    assert out2.shape == (20, num_classes)
    assert jnp.allclose(out2, ref2, atol=1e-5, rtol=1e-5)

    print("KERNEL_OK")
</pallas_src>

<mosaic_0001>
module attributes {stable_mosaic.version = 11 : i64} {
  func.func @mlp_kernel(%arg0: i32, %arg1: memref<8x64xf32, #tpu.memory_space<vmem>>, %arg2: memref<64x128xf32, #tpu.memory_space<vmem>>, %arg3: memref<1x128xf32, #tpu.memory_space<vmem>>, %arg4: memref<128x128xf32, #tpu.memory_space<vmem>>, %arg5: memref<1x10xf32, #tpu.memory_space<vmem>>, %arg6: memref<8x10xf32, #tpu.memory_space<vmem>>) attributes {dimension_semantics = [#tpu.dimension_semantics<parallel>], iteration_bounds = array<i64: 1>, scalar_prefetch = 0 : i64, scratch_operands = 0 : i64, tpu.core_type = #tpu.core_type<tc>, window_params = [{transform_indices = @transform_0, window_bounds = array<i64: 8, 64>}, {pipeline_mode = #tpu.pipeline_mode<synchronous>, transform_indices = @transform_1, window_bounds = array<i64: 64, 128>}, {pipeline_mode = #tpu.pipeline_mode<synchronous>, transform_indices = @transform_2, window_bounds = array<i64: 1, 128>}, {pipeline_mode = #tpu.pipeline_mode<synchronous>, transform_indices = @transform_3, window_bounds = array<i64: 128, 128>}, {pipeline_mode = #tpu.pipeline_mode<synchronous>, transform_indices = @transform_4, window_bounds = array<i64: 1, 10>}, {transform_indices = @transform_5, window_bounds = array<i64: 8, 10>}]} {
    %c0 = arith.constant 0 : index
    %c0_0 = arith.constant 0 : index
    %0 = vector.load %arg1[%c0, %c0_0] : memref<8x64xf32, #tpu.memory_space<vmem>>, vector<8x64xf32>
    %c0_1 = arith.constant 0 : index
    %c0_2 = arith.constant 0 : index
    %1 = vector.load %arg2[%c0_1, %c0_2] : memref<64x128xf32, #tpu.memory_space<vmem>>, vector<64x128xf32>
    %cst = arith.constant dense<0.000000e+00> : vector<8x128xf32>
    %2 = tpu.matmul %0, %1, %cst {dimension_numbers = #tpu.dot_dimension_numbers<[1], [0], [0], [1], [0, 0, 1, 1], [], []>} : vector<8x64xf32>, vector<64x128xf32>, vector<8x128xf32> -> vector<8x128xf32>
    %c0_3 = arith.constant 0 : index
    %c0_4 = arith.constant 0 : index
    %3 = vector.load %arg3[%c0_3, %c0_4] : memref<1x128xf32, #tpu.memory_space<vmem>>, vector<1x128xf32>
    %4 = vector.broadcast %3 : vector<1x128xf32> to vector<8x128xf32>
    %5 = arith.addf %2, %4 : vector<8x128xf32>
    %cst_5 = arith.constant 0.000000e+00 : f32
    %6 = vector.broadcast %cst_5 : f32 to vector<8x128xf32>
    %7 = arith.maximumf %5, %6 : vector<8x128xf32>
    %c0_6 = arith.constant 0 : index
    %c0_7 = arith.constant 0 : index
    %8 = vector.load %arg4[%c0_6, %c0_7] : memref<128x128xf32, #tpu.memory_space<vmem>>, vector<128x128xf32>
    %cst_8 = arith.constant dense<0.000000e+00> : vector<8x128xf32>
    %9 = tpu.matmul %7, %8, %cst_8 {dimension_numbers = #tpu.dot_dimension_numbers<[1], [0], [0], [1], [0, 0, 1, 1], [], []>} : vector<8x128xf32>, vector<128x128xf32>, vector<8x128xf32> -> vector<8x128xf32>
    %10 = vector.extract_strided_slice %9 {offsets = [0, 0], sizes = [8, 10], strides = [1, 1]} : vector<8x128xf32> to vector<8x10xf32>
    %c0_9 = arith.constant 0 : index
    %c0_10 = arith.constant 0 : index
    %11 = vector.load %arg5[%c0_9, %c0_10] : memref<1x10xf32, #tpu.memory_space<vmem>>, vector<1x10xf32>
    %12 = vector.broadcast %11 : vector<1x10xf32> to vector<8x10xf32>
    %13 = arith.addf %10, %12 : vector<8x10xf32>
    %c0_11 = arith.constant 0 : index
    %c0_12 = arith.constant 0 : index
    %14 = vector.load %arg6[%c0_11, %c0_12] : memref<8x10xf32, #tpu.memory_space<vmem>>, vector<8x10xf32>
    tpu.vector_store %arg6[%c0_11, %c0_12], %13 {strides = array<i32>} : memref<8x10xf32, #tpu.memory_space<vmem>>, vector<8x10xf32>,
    return
  }
  func.func @transform_0(%arg0: i32) -> (i32, i32) {
    %c0_i32 = arith.constant 0 : i32
    %c0_i32_0 = arith.constant 0 : i32
    return %arg0, %c0_i32 : i32, i32
  }
  func.func @transform_1(%arg0: i32) -> (i32, i32) {
    %c0_i32 = arith.constant 0 : i32
    %c0_i32_0 = arith.constant 0 : i32
    %c0_i32_1 = arith.constant 0 : i32
    return %c0_i32, %c0_i32_0 : i32, i32
  }
  func.func @transform_2(%arg0: i32) -> (i32, i32) {
    %c0_i32 = arith.constant 0 : i32
    %c0_i32_0 = arith.constant 0 : i32
    %c0_i32_1 = arith.constant 0 : i32
    return %c0_i32, %c0_i32_0 : i32, i32
  }
  func.func @transform_3(%arg0: i32) -> (i32, i32) {
    %c0_i32 = arith.constant 0 : i32
    %c0_i32_0 = arith.constant 0 : i32
    %c0_i32_1 = arith.constant 0 : i32
    return %c0_i32, %c0_i32_0 : i32, i32
  }
  func.func @transform_4(%arg0: i32) -> (i32, i32) {
    %c0_i32 = arith.constant 0 : i32
    %c0_i32_0 = arith.constant 0 : i32
    %c0_i32_1 = arith.constant 0 : i32
    return %c0_i32, %c0_i32_0 : i32, i32
  }
  func.func @transform_5(%arg0: i32) -> (i32, i32) {
    %c0_i32 = arith.constant 0 : i32
    %c0_i32_0 = arith.constant 0 : i32
    return %arg0, %c0_i32 : i32, i32
  }
}

</mosaic_0001>

<llo_original>
// kernel: tpu_custom_call.1
$region0: #{tpu_custom_call.1}
  #allocation0 [shape = 'u32[]', space=smem, size = 0x4, offset = 0x4, fixed_abs, tag = 'smem constant byte address 0x4 - core index']
  #allocation1 [shape = 'u32[144,128]{1,0:T(1,128)}', space=vmem, size = 0x12000, scoped, tag = 'internal scratch']
  %s0 = inlined_call_operand.hbm [shape: f32[8,64], index: 0, kind: input, shape index: {}]
  %s1 = inlined_call_operand.hbm [shape: f32[64,128], index: 1, kind: input, shape index: {}]
  %s2 = inlined_call_operand.vmem [shape: f32[1,128], index: 2, kind: input, shape index: {}]
  %s3 = inlined_call_operand.hbm [shape: f32[128,128], index: 3, kind: input, shape index: {}]
  %s4 = inlined_call_operand.vmem [shape: f32[1,10], index: 4, kind: input, shape index: {}]
  %s5 = inlined_call_operand.hbm [shape: f32[8,10], index: 5, kind: output, shape index: {}]
  %s6 = sld [smem:[#allocation0]]
  $region42: #{tpu_custom_call.1} parent=0
    _
  %s8 = ssub.s32 1, %s6
  %s9 = scalar_select 0, %s8, %s6
  $region1: #{tpu_custom_call.1} parent=0
    #allocation2 [shape = 'u8[4096]{0}', space=vmem, size = 0x1000, scoped, tag = 'input window, operand 0, single buffered']
    #allocation3 [shape = 's32[1]{0}', space=sflag, size = 0x4, scoped, tag = 'scoped memory for tpu_custom_call.1']
    #allocation4 [shape = 's32[1]{0}', space=sflag, size = 0x4, scoped, tag = 'scoped memory for tpu_custom_call.1']
    #allocation5 [shape = 'u8[32768]{0}', space=vmem, size = 0x8000, scoped, tag = 'input window, operand 1, single buffered']
    #allocation6 [shape = 's32[1]{0}', space=sflag, size = 0x4, scoped, tag = 'scoped memory for tpu_custom_call.1']
    #allocation7 [shape = 'u8[65536]{0}', space=vmem, size = 0x10000, scoped, tag = 'input window, operand 3, single buffered']
    #allocation8 [shape = 'u8[4096]{0}', space=vmem, size = 0x1000, scoped, tag = 'output window, operand 0, single buffered']
    %10 = vsyncpa [#allocation3], 0
    %11 = vsyncpa [#allocation6], 0
    %12 = vsyncpa [#allocation4], 0
    // Predicated region
    $region2: #{tpu_custom_call.1} parent=1 // pred_check
      _
    $region3: #{tpu_custom_call.1} parent=1 // pred_check_branch
      %14 = sbr.rel (0) target = $region5
    $region4: #{tpu_custom_call.1} parent=1 // pred_region
      %s16 = ssub.s32 128, 128
      %17 = vsyncadd [#allocation3], %s16
      %s19 = sshll.u32 [#allocation2], 4
      %s20 = int_to_ptr.vmem [resolvable:$true] %s19
      %22 = dma.hbm_to_vmem [thread:$0]  %s0, 128, %s20, [#allocation3]
    $region5: #{tpu_custom_call.1} parent=1 // pred_fallthru
      _
    // Predicated region
    $region6: #{tpu_custom_call.1} parent=1 // pred_check
      _
    $region7: #{tpu_custom_call.1} parent=1 // pred_check_branch
      %24 = sbr.rel (0) target = $region9
    $region8: #{tpu_custom_call.1} parent=1 // pred_region
      %s26 = ssub.s32 1024, 1024
      %27 = vsyncadd [#allocation6], %s26
      %s28 = sshll.u32 [#allocation5], 4
      %s29 = int_to_ptr.vmem [resolvable:$true] %s28
      %34 = dma.hbm_to_vmem [thread:$0]  %s1, 1024, %s29, [#allocation6], 128, 128, 8
    $region9: #{tpu_custom_call.1} parent=1 // pred_fallthru
      _
    // Predicated region
    $region10: #{tpu_custom_call.1} parent=1 // pred_check
      _
    $region11: #{tpu_custom_call.1} parent=1 // pred_check_branch
      %36 = sbr.rel (0) target = $region13
    $region12: #{tpu_custom_call.1} parent=1 // pred_region
      _
    $region13: #{tpu_custom_call.1} parent=1 // pred_fallthru
      _
    // Predicated region
    $region14: #{tpu_custom_call.1} parent=1 // pred_check
      _
    $region15: #{tpu_custom_call.1} parent=1 // pred_check_branch
      %38 = sbr.rel (0) target = $region17
    $region16: #{tpu_custom_call.1} parent=1 // pred_region
      %s40 = ssub.s32 2048, 2048
      %41 = vsyncadd [#allocation6], %s40
      %s42 = sshll.u32 [#allocation7], 4
      %s43 = int_to_ptr.vmem [resolvable:$true] %s42
      %48 = dma.hbm_to_vmem [thread:$0]  %s3, 2048, %s43, [#allocation6], 128, 128, 8
    $region17: #{tpu_custom_call.1} parent=1 // pred_fallthru
      _
    // Predicated region
    $region18: #{tpu_custom_call.1} parent=1 // pred_check
      _
    $region19: #{tpu_custom_call.1} parent=1 // pred_check_branch
      %50 = sbr.rel (0) target = $region21
    $region20: #{tpu_custom_call.1} parent=1 // pred_region
      _
    $region21: #{tpu_custom_call.1} parent=1 // pred_fallthru
      _
    // Predicated region
    $region22: #{tpu_custom_call.1} parent=1 // pred_check
      _
    $region23: #{tpu_custom_call.1} parent=1 // pred_check_branch
      %52 = sbr.rel (0) target = $region25
    $region24: #{tpu_custom_call.1} parent=1 // pred_region
      %53 = dma.done [#allocation3], 128
    $region25: #{tpu_custom_call.1} parent=1 // pred_fallthru
      _
    // Predicated region
    $region26: #{tpu_custom_call.1} parent=1 // pred_check
      _
    $region27: #{tpu_custom_call.1} parent=1 // pred_check_branch
      %55 = sbr.rel (0) target = $region29
    $region28: #{tpu_custom_call.1} parent=1 // pred_region
      %56 = dma.done [#allocation6], 1024
    $region29: #{tpu_custom_call.1} parent=1 // pred_fallthru
      _
    // Predicated region
    $region30: #{tpu_custom_call.1} parent=1 // pred_check
      _
    $region31: #{tpu_custom_call.1} parent=1 // pred_check_branch
      %58 = sbr.rel (0) target = $region33
    $region32: #{tpu_custom_call.1} parent=1 // pred_region
      %59 = dma.done [#allocation6], 2048
    $region33: #{tpu_custom_call.1} parent=1 // pred_fallthru
      _
    %v60 = vld [vmem:[#allocation2] sm:$0xff]
    %v61 = vld [vmem:[#allocation5] sm:$0xff]
    %v62 = vld [vmem:[#allocation5 + $0x8] sm:$0xff]
    %v63 = vld [vmem:[#allocation5 + $0x10] sm:$0xff]
    %v64 = vld [vmem:[#allocation5 + $0x18] sm:$0xff]
    %v65 = vld [vmem:[#allocation5 + $0x20] sm:$0xff]
    %v66 = vld [vmem:[#allocation5 + $0x28] sm:$0xff]
    %v67 = vld [vmem:[#allocation5 + $0x30] sm:$0xff]
    %v68 = vld [vmem:[#allocation5 + $0x38] sm:$0xff]
    %v69 = vld [vmem:[%s2] sm:$0x1]
    %v71 = vlaneseq
    %v72 = vshrl.u32 %v71, 7
    %v73 = vsub.s32 0, %v72
    %v74 = vrot.slane %v69, %v73
    %vm76 = vcmask 523264
    %v78 = vsel %vm76, %v60, 0
    %80 = vmatprep.subr.mxu0 0.0
    %81 = vmatpush1.msra.mxu0 %v61
    %82 = vmatprep.subr.mxu0 0.0
    %83 = vmatpush1.msra.mxu0 %v62
    %84 = vmatprep.subr.mxu0 0.0
    %85 = vmatpush1.msra.mxu0 %v63
    %86 = vmatprep.subr.mxu0 0.0
    %87 = vmatpush1.msra.mxu0 %v64
    %88 = vmatprep.subr.mxu0 0.0
    %89 = vmatpush1.msra.mxu0 %v65
    %90 = vmatprep.subr.mxu0 0.0
    %91 = vmatpush1.msra.mxu0 %v66
    %92 = vmatprep.subr.mxu0 0.0
    %93 = vmatpush1.msra.mxu0 %v67
    %94 = vmatprep.subr.mxu0 0.0
    %95 = vmatpush1.msra.mxu0 %v68
    %96 = vmatprep.subr.mxu0 0.0
    %97 = vmatpush1.msra.mxu0 0.0
    %98 = vmatprep.subr.mxu0 0.0
    %99 = vmatpush1.msra.mxu0 0.0
    %100 = vmatprep.subr.mxu0 0.0
    %101 = vmatpush1.msra.mxu0 0.0
    %102 = vmatprep.subr.mxu0 0.0
    %103 = vmatpush1.msra.mxu0 0.0
    %104 = vmatprep.subr.mxu0 0.0
    %105 = vmatpush1.msra.mxu0 0.0
    %106 = vmatprep.subr.mxu0 0.0
    %107 = vmatpush1.msra.mxu0 0.0
    %108 = vmatprep.subr.mxu0 0.0
    %109 = vmatpush1.msra.mxu0 0.0
    %110 = vmatprep.subr.mxu0 0.0
    %111 = vmatpush1.msra.mxu0 0.0
    %112 = vmatprep.subr.mxu0 0.0
    %113 = vmatpush1.msra.mxu0 0.0
    %114 = vmatprep.subr.mxu0 0.0
    %115 = vmatpush1.msra.mxu0 0.0
    %116 = vmatprep.subr.mxu0 0.0
    %117 = vmatpush1.msra.mxu0 0.0
    %118 = vmatprep.subr.mxu0 0.0
    %119 = vmatpush1.msra.mxu0 0.0
    %120 = vmatprep.subr.mxu0 0.0
    %121 = vmatpush1.msra.mxu0 0.0
    %122 = vmatprep.subr.mxu0 0.0
    %123 = vmatpush1.msra.mxu0 0.0
    %124 = vmatprep.subr.mxu0 0.0
    %125 = vmatpush1.msra.mxu0 0.0
    %126 = vmatprep.subr.mxu0 0.0
    %127 = vmatpush1.msra.mxu0 0.0
    %128 = vmatprep.subr.mxu0 0.0
    %129 = vmatpush1.msra.mxu0 0.0
    %130 = vmatprep.subr.mxu0 0.0
    %131 = vmatpush1.msra.mxu0 0.0
    %132 = vmatprep.subr.mxu0 0.0
    %133 = vmatpush1.msra.mxu0 0.0
    %134 = vmatprep.subr.mxu0 0.0
    %135 = vmatpush1.msra.mxu0 0.0
    %136 = vmatprep.subr.mxu0 0.0
    %137 = vmatpush1.msra.mxu0 0.0
    %138 = vmatprep.subr.mxu0 0.0
    %139 = vmatpush1.msra.mxu0 0.0
    %140 = vmatprep.subr.mxu0 0.0
    %141 = vmatpush1.msra.mxu0 0.0
    %142 = vmatprep.subr.mxu0 0.0
    %143 = vmatpush1.msra.mxu0 0.0
    %144 = vmatprep.mubr.f32.mxu0 0.0
    %145 = vmatmul.mubr.f32.gmra.mrb[0].mxu0 %v78
    %v146 = vpop.f32.mrb[0].mxu0
    %v147 = vadd.f32 %v74, %v146
    %v148 = vpop.f32.mrb[0].mxu0
    %149 = vdwg.mxu0
    %v150 = vmax.f32 %v147, 0.0
    %v151 = vld [vmem:[#allocation7] sm:$0xff]
    %v152 = vld [vmem:[#allocation7 + $0x8] sm:$0xff]
    %v153 = vld [vmem:[#allocation7 + $0x10] sm:$0xff]
    %v154 = vld [vmem:[#allocation7 + $0x18] sm:$0xff]
    %v155 = vld [vmem:[#allocation7 + $0x20] sm:$0xff]
    %v156 = vld [vmem:[#allocation7 + $0x28] sm:$0xff]
    %v157 = vld [vmem:[#allocation7 + $0x30] sm:$0xff]
    %v158 = vld [vmem:[#allocation7 + $0x38] sm:$0xff]
    %v159 = vld [vmem:[#allocation7 + $0x40] sm:$0xff]
    %v160 = vld [vmem:[#allocation7 + $0x48] sm:$0xff]
    %v161 = vld [vmem:[#allocation7 + $0x50] sm:$0xff]
    %v162 = vld [vmem:[#allocation7 + $0x58] sm:$0xff]
    %v163 = vld [vmem:[#allocation7 + $0x60] sm:$0xff]
    %v164 = vld [vmem:[#allocation7 + $0x68] sm:$0xff]
    %v165 = vld [vmem:[#allocation7 + $0x70] sm:$0xff]
    %v166 = vld [vmem:[#allocation7 + $0x78] sm:$0xff]
    %167 = vmatprep.subr.mxu0 0.0
    %168 = vmatpush1.msra.mxu0 %v151
    %169 = vmatprep.subr.mxu0 0.0
    %170 = vmatpush1.msra.mxu0 %v152
    %171 = vmatprep.subr.mxu0 0.0
    %172 = vmatpush1.msra.mxu0 %v153
    %173 = vmatprep.subr.mxu0 0.0
    %174 = vmatpush1.msra.mxu0 %v154
    %175 = vmatprep.subr.mxu0 0.0
    %176 = vmatpush1.msra.mxu0 %v155
    %177 = vmatprep.subr.mxu0 0.0
    %178 = vmatpush1.msra.mxu0 %v156
    %179 = vmatprep.subr.mxu0 0.0
    %180 = vmatpush1.msra.mxu0 %v157
    %181 = vmatprep.subr.mxu0 0.0
    %182 = vmatpush1.msra.mxu0 %v158
    %183 = vmatprep.subr.mxu0 0.0
    %184 = vmatpush1.msra.mxu0 %v159
    %185 = vmatprep.subr.mxu0 0.0
    %186 = vmatpush1.msra.mxu0 %v160
    %187 = vmatprep.subr.mxu0 0.0
    %188 = vmatpush1.msra.mxu0 %v161
    %189 = vmatprep.subr.mxu0 0.0
    %190 = vmatpush1.msra.mxu0 %v162
    %191 = vmatprep.subr.mxu0 0.0
    %192 = vmatpush1.msra.mxu0 %v163
    %193 = vmatprep.subr.mxu0 0.0
    %194 = vmatpush1.msra.mxu0 %v164
    %195 = vmatprep.subr.mxu0 0.0
    %196 = vmatpush1.msra.mxu0 %v165
    %197 = vmatprep.subr.mxu0 0.0
    %198 = vmatpush1.msra.mxu0 %v166
    %199 = vmatprep.subr.mxu0 0.0
    %200 = vmatpush1.msra.mxu0 0.0
    %201 = vmatprep.subr.mxu0 0.0
    %202 = vmatpush1.msra.mxu0 0.0
    %203 = vmatprep.subr.mxu0 0.0
    %204 = vmatpush1.msra.mxu0 0.0
    %205 = vmatprep.subr.mxu0 0.0
    %206 = vmatpush1.msra.mxu0 0.0
    %207 = vmatprep.subr.mxu0 0.0
    %208 = vmatpush1.msra.mxu0 0.0
    %209 = vmatprep.subr.mxu0 0.0
    %210 = vmatpush1.msra.mxu0 0.0
    %211 = vmatprep.subr.mxu0 0.0
    %212 = vmatpush1.msra.mxu0 0.0
    %213 = vmatprep.subr.mxu0 0.0
    %214 = vmatpush1.msra.mxu0 0.0
    %215 = vmatprep.subr.mxu0 0.0
    %216 = vmatpush1.msra.mxu0 0.0
    %217 = vmatprep.subr.mxu0 0.0
    %218 = vmatpush1.msra.mxu0 0.0
    %219 = vmatprep.subr.mxu0 0.0
    %220 = vmatpush1.msra.mxu0 0.0
    %221 = vmatprep.subr.mxu0 0.0
    %222 = vmatpush1.msra.mxu0 0.0
    %223 = vmatprep.subr.mxu0 0.0
    %224 = vmatpush1.msra.mxu0 0.0
    %225 = vmatprep.subr.mxu0 0.0
    %226 = vmatpush1.msra.mxu0 0.0
    %227 = vmatprep.subr.mxu0 0.0
    %228 = vmatpush1.msra.mxu0 0.0
    %229 = vmatprep.subr.mxu0 0.0
    %230 = vmatpush1.msra.mxu0 0.0
    %231 = vmatprep.mubr.f32.mxu0 0.0
    %232 = vmatmul.mubr.f32.gmra.mrb[0].mxu0 %v150
    %v233 = vpop.f32.mrb[0].mxu0
    %v234 = vadd.f32 0.0, %v233
    %v235 = vpop.f32.mrb[0].mxu0
    %236 = vdwg.mxu0
    %v237 = vld [vmem:[%s4] sm:$0x1]
    %v239 = vlaneseq
    %v240 = vshrl.u32 %v239, 7
    %v241 = vsub.s32 0, %v240
    %v242 = vrot.slane %v237, %v241
    %v244 = vadd.f32 %v234, %v242
    %vm245 = vcmask 80896
    %246 = vst.msk [vmem:[#allocation8] sm:$0xff] %vm245, %v244
    // Predicated region
    $region34: #{tpu_custom_call.1} parent=1 // pred_check
      _
    $region35: #{tpu_custom_call.1} parent=1 // pred_check_branch
      %248 = sbr.rel (0) target = $region37
    $region36: #{tpu_custom_call.1} parent=1 // pred_region
      %s250 = ssub.s32 128, 128
      %251 = vsyncadd [#allocation4], %s250
      %s253 = sshll.u32 [#allocation8], 4
      %s254 = int_to_ptr.vmem [resolvable:$true] %s253
      %256 = dma.vmem_to_hbm [thread:$0]  %s254, 128, %s5, [#allocation4]
    $region37: #{tpu_custom_call.1} parent=1 // pred_fallthru
      _
    // Predicated region
    $region38: #{tpu_custom_call.1} parent=1 // pred_check
      _
    $region39: #{tpu_custom_call.1} parent=1 // pred_check_branch
      %258 = sbr.rel (0) target = $region41
    $region40: #{tpu_custom_call.1} parent=1 // pred_region
      %259 = dma.done [#allocation4], 128
    $region41: #{tpu_custom_call.1} parent=1 // pred_fallthru
      _
    %260 = vsyncpa [#allocation3], 1
    %261 = vsyncpa [#allocation6], 1
    %262 = vsyncpa [#allocation4], 1

</llo_original>
